<compile_context>
chip_gen: v5e
topology: v5e:2x2
jax: 0.10.0
libtpu: 0.0.40
codegen_flags: <defaults>
</compile_context>

<pallas_src>
import functools

import jax
import jax.numpy as jnp
import numpy as np
from jax.experimental import pallas as pl
from jax.experimental.pallas import tpu as pltpu


def _round_up(a, b):
    return (a + b - 1) // b * b


def _cdiv(a, b):
    return (a + b - 1) // b


def _num_tensorcores():
    """Best-effort TensorCore count per chip (v7x has 2); defaults to 1."""
    try:
        kind = jax.devices()[0].device_kind.lower()
    except Exception:
        return 1
    return 2 if ("v7" in kind or "7x" in kind) else 1


def _vmem_capacity_bytes():
    try:
        return int(pltpu.get_tpu_info().vmem_capacity_bytes)
    except Exception:
        return 128 << 20


def _stencil_kernel(w_ref, x_ref, o_ref, *, W, S):
    """Nine-point circular stencil on a (TN, H*W) block, strip-mined over sublanes.

    w_ref : (9,)      f32 SMEM  - 3x3 weights (row-major), already divided by intervel
    x_ref : (TN, H*W) VMEM      - TN independent images, spatial dims flattened row-major
    o_ref : (TN, H*W) VMEM
    """
    tn, hw = x_ref.shape
    n_strips = tn // S

    def roll1(v, shift):
        shift = shift % hw
        return v if shift == 0 else pltpu.roll(v, shift, axis=1)

    # SMEM weights -> scalar locals, read once per kernel invocation (not per strip).
    w = [w_ref[i] for i in range(9)]

    # Lane-position masks for the per-row circular wrap along W, hoisted out of the
    # strip loop (one iota + rem/and + 2 compares per block, not per strip/element).
    lane = jax.lax.broadcasted_iota(jnp.int32, (S, hw), 1)
    if W & (W - 1) == 0:
        wpos = lane & jnp.int32(W - 1)
    else:
        wpos = jax.lax.rem(lane, jnp.int32(W))
    m_left = wpos == 0            # w == 0     column of each image row
    m_right = wpos == W - 1       # w == W - 1 column of each image row

    def strip(s, carry):
        r0 = pl.multiple_of(s * S, S)
        x = x_ref[pl.ds(r0, S), :].astype(jnp.float32)

        # Neighbours along W with per-image circular wrap: a +-1 roll of the flattened
        # (H*W) axis is correct everywhere except at the w==0 / w==W-1 columns, where
        # the opposite edge of the SAME image row is patched in (XLU rolls + 1 select).
        x_wm1 = jnp.where(m_left, roll1(x, hw - (W - 1)), roll1(x, 1))
        x_wp1 = jnp.where(m_right, roll1(x, W - 1), roll1(x, hw - 1))
        cols = (x_wm1, x, x_wp1)

        # p == 1 (no H-shift) initialises the accumulator directly (no zeros init).
        acc = w[3] * cols[0] + w[4] * cols[1] + w[5] * cols[2]
        for p in (0, 2):
            row = w[3 * p] * cols[0] + w[3 * p + 1] * cols[1] + w[3 * p + 2] * cols[2]
            # Rolling the flattened axis by a multiple of W == circular shift along H.
            acc = acc + roll1(row, W * (1 - p))
        o_ref[pl.ds(r0, S), :] = acc.astype(o_ref.dtype)
        return carry

    if n_strips == 1:
        strip(0, 0)
    else:
        jax.lax.fori_loop(0, n_strips, strip, 0, unroll=min(n_strips, 4))


def second_derivative(x, weight, intervel, position=(-2, -1)):
    """JAX/Pallas equivalent of Second_Derivative_Layer.forward."""
    # Same transpose(-2, pos0) / transpose(-1, pos1) ordering as the PyTorch module.
    # NOTE: default position=(-2,-1) is the fast path (both swapaxes are no-ops elided
    # by XLA); other positions add full-tensor transposes around the kernel.
    x = jnp.swapaxes(x, -2, position[0])
    x = jnp.swapaxes(x, -1, position[1])
    oshape = x.shape
    H, W = int(oshape[-2]), int(oshape[-1])
    HW = H * W
    n = int(np.prod(oshape[:-2])) if len(oshape) > 2 else 1

    # Pure row-major reshape (no data movement): lane axis becomes H*W (lane-dense),
    # input dtype streamed as-is (no wrapper-side astype / pad passes over HBM).
    xf = x.reshape(n, HW)
    itemsize = jnp.dtype(xf.dtype).itemsize
    row_bytes = HW * itemsize

    # Fold 1/intervel into the 3x3 weights (removes per-element divides in-kernel).
    w_eff = (weight.astype(jnp.float32)
             / intervel.astype(jnp.float32).reshape(-1)[0]).reshape(9)

    # ---- per-generation tiling & VMEM budget ------------------------------------
    vmem_cap = _vmem_capacity_bytes()                 # 128 MiB v5e/v6e, 64 MiB/TC v7x
    vmem_limit = min(vmem_cap * 3 // 4, 100 << 20)    # ~96 MiB / ~48 MiB
    # in+out blocks are double-buffered (4 block-sized VMEM buffers); the strip-mined
    # body keeps temporaries in vregs, so block_bytes ~= vmem_limit / 8 is safe.
    block_bytes = max(1 << 20, min(16 << 20, vmem_limit // 8))

    num_tc = _num_tensorcores()

    if n < 8:
        tn = n                      # single block == full (non-8-multiple) extent
        S = n
    else:
        tn = max(8, (block_bytes // row_bytes) // 8 * 8)
        tn = min(tn, (n // 8) * 8)
        # Strip height: keep each (S, H*W) temporary at <= ~4 vregs so the inner-loop
        # intermediates stay in registers (S a multiple of 8, dividing tn).
        S = max(8, min(64, (16384 // max(row_bytes, 1)) // 8 * 8))
        S = min(S, tn)
        tn = (tn // S) * S

    n_blocks = _cdiv(n, tn)
    # Megacore (v7x): make the number of grid steps a multiple of the TC count so no
    # core idles on the tail; skipped entirely on single-TC parts.
    if num_tc > 1 and n_blocks % num_tc != 0 and n >= num_tc * S:
        target = _round_up(max(n_blocks, num_tc), num_tc)
        tn2 = _round_up(_cdiv(n, target), S)
        if 0 < tn2 <= tn:
            tn = tn2
            n_blocks = _cdiv(n, tn)

    # Very wide images: even the minimum 8-row block can exceed the planned budget;
    # raise the scoped-VMEM limit toward physical capacity instead of OOMing.
    # TODO(synk): spatial tiling with a 1-row/col halo for images too large even then.
    buffered = 4 * tn * row_bytes
    if buffered + (4 << 20) > vmem_limit:
        vmem_limit = min(vmem_cap, buffered + (4 << 20))

    kernel = functools.partial(_stencil_kernel, W=W, S=S)
    out = pl.pallas_call(
        kernel,
        out_shape=jax.ShapeDtypeStruct((n, HW), xf.dtype),
        grid=(n_blocks,),
        in_specs=[
            pl.BlockSpec(memory_space=pltpu.MemorySpace.SMEM),   # weights (9,)
            pl.BlockSpec((tn, HW), lambda i: (i, 0)),            # batched image rows
        ],
        out_specs=pl.BlockSpec((tn, HW), lambda i: (i, 0)),
        compiler_params=pltpu.CompilerParams(
            dimension_semantics=("parallel",),
            vmem_limit_bytes=int(vmem_limit)),
    )(w_eff, xf)

    out = out.reshape(oshape)
    out = jnp.swapaxes(out, -1, position[1])
    out = jnp.swapaxes(out, -2, position[0])
    return out


def _numpy_reference(x, w, iv):
    # out[i,j] = sum_{p,q} w[p,q] * x[(i+p-1)%H, (j+q-1)%W]  (circular pad + conv2d)
    out = np.zeros_like(x, dtype=np.float32)
    for p in range(3):
        for q in range(3):
            out += w[p, q] * np.roll(x, shift=(1 - p, 1 - q), axis=(-2, -1))
    return out / iv[0]


if __name__ == "__main__":
    key = jax.random.PRNGKey(0)
    B, C, H, W = 2, 4, 16, 16
    x = jax.random.normal(key, (B, C, H, W), dtype=jnp.float32)

    # Deterministic module "parameters" (non-trainable buffer in the PyTorch module).
    weight = jnp.array(
        [[1 / 3, 1 / 3, 1 / 3],
         [1 / 3, -8 / 3, 1 / 3],
         [1 / 3, 1 / 3, 1 / 3]], dtype=jnp.float32)
    intervel = jnp.array([1.0], dtype=jnp.float32)

    out = second_derivative(x, weight, intervel)
    out = jax.block_until_ready(out)

    ref = _numpy_reference(np.asarray(x), np.asarray(weight), np.asarray(intervel))
    np.testing.assert_allclose(np.asarray(out), ref, rtol=1e-5, atol=1e-5)
    print("KERNEL_OK")
</pallas_src>

<mosaic_0001>
module attributes {stable_mosaic.version = 11 : i64} {
  func.func @_stencil_kernel(%arg0: i32, %arg1: memref<9xf32, #tpu.memory_space<smem>>, %arg2: memref<8x256xf32, #tpu.memory_space<vmem>>, %arg3: memref<8x256xf32, #tpu.memory_space<vmem>>) attributes {dimension_semantics = [#tpu.dimension_semantics<parallel>], iteration_bounds = array<i64: 1>, scalar_prefetch = 0 : i64, scratch_operands = 0 : i64, tpu.core_type = #tpu.core_type<tc>, window_params = [{transform_indices = @transform_0, window_bounds = array<i64: 9>}, {transform_indices = @transform_1, window_bounds = array<i64: 8, 256>}, {transform_indices = @transform_2, window_bounds = array<i64: 8, 256>}]} {
    %c0 = arith.constant 0 : index
    %0 = memref.load %arg1[%c0] : memref<9xf32, #tpu.memory_space<smem>>
    %c1 = arith.constant 1 : index
    %1 = memref.load %arg1[%c1] : memref<9xf32, #tpu.memory_space<smem>>
    %c2 = arith.constant 2 : index
    %2 = memref.load %arg1[%c2] : memref<9xf32, #tpu.memory_space<smem>>
    %c3 = arith.constant 3 : index
    %3 = memref.load %arg1[%c3] : memref<9xf32, #tpu.memory_space<smem>>
    %c4 = arith.constant 4 : index
    %4 = memref.load %arg1[%c4] : memref<9xf32, #tpu.memory_space<smem>>
    %c5 = arith.constant 5 : index
    %5 = memref.load %arg1[%c5] : memref<9xf32, #tpu.memory_space<smem>>
    %c6 = arith.constant 6 : index
    %6 = memref.load %arg1[%c6] : memref<9xf32, #tpu.memory_space<smem>>
    %c7 = arith.constant 7 : index
    %7 = memref.load %arg1[%c7] : memref<9xf32, #tpu.memory_space<smem>>
    %c8 = arith.constant 8 : index
    %8 = memref.load %arg1[%c8] : memref<9xf32, #tpu.memory_space<smem>>
    %9 = tpu.iota {dimensions = array<i32: 1>} : vector<8x256xi32>
    %c15_i32 = arith.constant 15 : i32
    %10 = vector.broadcast %c15_i32 : i32 to vector<8x256xi32>
    %11 = arith.andi %9, %10 : vector<8x256xi32>
    %c0_i32 = arith.constant 0 : i32
    %12 = vector.broadcast %c0_i32 : i32 to vector<8x256xi32>
    %13 = arith.cmpi eq, %11, %12 : vector<8x256xi32>
    %c15_i32_0 = arith.constant 15 : i32
    %14 = vector.broadcast %c15_i32_0 : i32 to vector<8x256xi32>
    %15 = arith.cmpi eq, %11, %14 : vector<8x256xi32>
    %c0_i32_1 = arith.constant 0 : i32
    %16 = tpu.assume_multiple %c0_i32_1, 8 : i32
    %17 = arith.index_cast %16 : i32 to index
    %c0_2 = arith.constant 0 : index
    %18 = vector.load %arg2[%17, %c0_2] : memref<8x256xf32, #tpu.memory_space<vmem>>, vector<8x256xf32>
    %c241_i32 = arith.constant 241 : i32
    %19 = tpu.dynamic_rotate %18 by %c241_i32 dim 1 : vector<8x256xf32>, i32 -> vector<8x256xf32>
    %c1_i32 = arith.constant 1 : i32
    %20 = tpu.dynamic_rotate %18 by %c1_i32 dim 1 : vector<8x256xf32>, i32 -> vector<8x256xf32>
    %21 = arith.select %13, %19, %20 : vector<8x256xi1>, vector<8x256xf32>
    %c15_i32_3 = arith.constant 15 : i32
    %22 = tpu.dynamic_rotate %18 by %c15_i32_3 dim 1 : vector<8x256xf32>, i32 -> vector<8x256xf32>
    %c255_i32 = arith.constant 255 : i32
    %23 = tpu.dynamic_rotate %18 by %c255_i32 dim 1 : vector<8x256xf32>, i32 -> vector<8x256xf32>
    %24 = arith.select %15, %22, %23 : vector<8x256xi1>, vector<8x256xf32>
    %25 = vector.broadcast %3 : f32 to vector<8x256xf32>
    %26 = arith.mulf %25, %21 : vector<8x256xf32>
    %27 = vector.broadcast %4 : f32 to vector<8x256xf32>
    %28 = arith.mulf %27, %18 : vector<8x256xf32>
    %29 = arith.addf %26, %28 : vector<8x256xf32>
    %30 = vector.broadcast %5 : f32 to vector<8x256xf32>
    %31 = arith.mulf %30, %24 : vector<8x256xf32>
    %32 = arith.addf %29, %31 : vector<8x256xf32>
    %33 = vector.broadcast %0 : f32 to vector<8x256xf32>
    %34 = arith.mulf %33, %21 : vector<8x256xf32>
    %35 = vector.broadcast %1 : f32 to vector<8x256xf32>
    %36 = arith.mulf %35, %18 : vector<8x256xf32>
    %37 = arith.addf %34, %36 : vector<8x256xf32>
    %38 = vector.broadcast %2 : f32 to vector<8x256xf32>
    %39 = arith.mulf %38, %24 : vector<8x256xf32>
    %40 = arith.addf %37, %39 : vector<8x256xf32>
    %c16_i32 = arith.constant 16 : i32
    %41 = tpu.dynamic_rotate %40 by %c16_i32 dim 1 : vector<8x256xf32>, i32 -> vector<8x256xf32>
    %42 = arith.addf %32, %41 : vector<8x256xf32>
    %43 = vector.broadcast %6 : f32 to vector<8x256xf32>
    %44 = arith.mulf %43, %21 : vector<8x256xf32>
    %45 = vector.broadcast %7 : f32 to vector<8x256xf32>
    %46 = arith.mulf %45, %18 : vector<8x256xf32>
    %47 = arith.addf %44, %46 : vector<8x256xf32>
    %48 = vector.broadcast %8 : f32 to vector<8x256xf32>
    %49 = arith.mulf %48, %24 : vector<8x256xf32>
    %50 = arith.addf %47, %49 : vector<8x256xf32>
    %c240_i32 = arith.constant 240 : i32
    %51 = tpu.dynamic_rotate %50 by %c240_i32 dim 1 : vector<8x256xf32>, i32 -> vector<8x256xf32>
    %52 = arith.addf %42, %51 : vector<8x256xf32>
    %53 = arith.index_cast %16 : i32 to index
    %c0_4 = arith.constant 0 : index
    %54 = vector.load %arg3[%53, %c0_4] : memref<8x256xf32, #tpu.memory_space<vmem>>, vector<8x256xf32>
    tpu.vector_store %arg3[%53, %c0_4], %52 {strides = array<i32>} : memref<8x256xf32, #tpu.memory_space<vmem>>, vector<8x256xf32>,
    return
  }
  func.func @transform_0(%arg0: i32) -> i32 {
    %c0_i32 = arith.constant 0 : i32
    %c0_i32_0 = arith.constant 0 : i32
    return %c0_i32 : i32
  }
  func.func @transform_1(%arg0: i32) -> (i32, i32) {
    %c0_i32 = arith.constant 0 : i32
    %c0_i32_0 = arith.constant 0 : i32
    return %arg0, %c0_i32 : i32, i32
  }
  func.func @transform_2(%arg0: i32) -> (i32, i32) {
    %c0_i32 = arith.constant 0 : i32
    %c0_i32_0 = arith.constant 0 : i32
    return %arg0, %c0_i32 : i32, i32
  }
}

</mosaic_0001>

<llo_original>
// kernel: tpu_custom_call.1
$region0: #{tpu_custom_call.1}
  #allocation0 [shape = 'u32[]', space=smem, size = 0x4, offset = 0x4, fixed_abs, tag = 'smem constant byte address 0x4 - core index']
  #allocation1 [shape = 'u32[72,128]{1,0:T(1,128)}', space=vmem, size = 0x9000, scoped, tag = 'internal scratch']
  %s0 = inlined_call_operand.hbm [shape: f32[9], index: 0, kind: input, shape index: {}]
  %s1 = inlined_call_operand.hbm [shape: f32[8,256], index: 1, kind: input, shape index: {}]
  %s2 = inlined_call_operand.hbm [shape: f32[8,256], index: 2, kind: output, shape index: {}]
  %s3 = sld [smem:[#allocation0]]
  $region26: #{tpu_custom_call.1} parent=0
    _
  %s5 = ssub.s32 1, %s3
  %s6 = scalar_select 0, %s5, %s3
  $region1: #{tpu_custom_call.1} parent=0
    #allocation2 [shape = 'u8[512]{0}', space=smem, size = 0x200, scoped, tag = 'input window, operand 0, single buffered']
    #allocation3 [shape = 's32[1]{0}', space=sflag, size = 0x4, scoped, tag = 'scoped memory for tpu_custom_call.1']
    #allocation4 [shape = 's32[1]{0}', space=sflag, size = 0x4, scoped, tag = 'scoped memory for tpu_custom_call.1']
    #allocation5 [shape = 's32[1]{0}', space=sflag, size = 0x4, scoped, tag = 'scoped memory for tpu_custom_call.1']
    #allocation6 [shape = 'u8[8192]{0}', space=vmem, size = 0x2000, scoped, tag = 'input window, operand 1, single buffered']
    #allocation7 [shape = 'u8[8192]{0}', space=vmem, size = 0x2000, scoped, tag = 'output window, operand 0, single buffered']
    %7 = vsyncpa [#allocation5], 0
    %8 = vsyncpa [#allocation3], 0
    %9 = vsyncpa [#allocation4], 0
    // Predicated region
    $region2: #{tpu_custom_call.1} parent=1 // pred_check
      _
    $region3: #{tpu_custom_call.1} parent=1 // pred_check_branch
      %11 = sbr.rel (0) target = $region5
    $region4: #{tpu_custom_call.1} parent=1 // pred_region
      %13 = vsyncadd [#allocation5], 0
      %s15 = sshll.u32 %s0, 4
      %s16 = int_to_ptr.hbm [resolvable:$true] %s15
      %18 = dma.hbm_to_smem %s16, 16, [#allocation2], [#allocation5]
    $region5: #{tpu_custom_call.1} parent=1 // pred_fallthru
      _
    // Predicated region
    $region6: #{tpu_custom_call.1} parent=1 // pred_check
      _
    $region7: #{tpu_custom_call.1} parent=1 // pred_check_branch
      %20 = sbr.rel (0) target = $region9
    $region8: #{tpu_custom_call.1} parent=1 // pred_region
      %22 = vsyncadd [#allocation3], 0
      %s24 = sshll.u32 %s1, 4
      %s25 = int_to_ptr.hbm [resolvable:$true] %s24
      %s26 = sshll.u32 [#allocation6], 4
      %s27 = int_to_ptr.vmem [resolvable:$true] %s26
      %29 = dma.hbm_to_vmem [thread:$0]  %s25, 256, %s27, [#allocation3]
    $region9: #{tpu_custom_call.1} parent=1 // pred_fallthru
      _
    // Predicated region
    $region10: #{tpu_custom_call.1} parent=1 // pred_check
      _
    $region11: #{tpu_custom_call.1} parent=1 // pred_check_branch
      %31 = sbr.rel (0) target = $region13
    $region12: #{tpu_custom_call.1} parent=1 // pred_region
      %33 = dma.done [#allocation5], 16
    $region13: #{tpu_custom_call.1} parent=1 // pred_fallthru
      _
    // Predicated region
    $region14: #{tpu_custom_call.1} parent=1 // pred_check
      _
    $region15: #{tpu_custom_call.1} parent=1 // pred_check_branch
      %35 = sbr.rel (0) target = $region17
    $region16: #{tpu_custom_call.1} parent=1 // pred_region
      %37 = dma.done [#allocation3], 256
    $region17: #{tpu_custom_call.1} parent=1 // pred_fallthru
      _
    %38 = sfence
    %s39 = sld [smem:[#allocation2]]
    %s40 = sld [smem:[#allocation2 + $0x1]]
    %s41 = sld [smem:[#allocation2 + $0x2]]
    %s42 = sld [smem:[#allocation2 + $0x3]]
    %s43 = sld [smem:[#allocation2 + $0x4]]
    %s44 = sld [smem:[#allocation2 + $0x5]]
    %s45 = sld [smem:[#allocation2 + $0x6]]
    %s46 = sld [smem:[#allocation2 + $0x7]]
    %s47 = sld [smem:[#allocation2 + $0x8]]
    %v48 = vlaneseq
    %v49 = vand.u32 %v48, 127
    %v50 = vadd.s32 %v49, 128
    %v51 = vand.u32 %v49, 15
    %v52 = vand.u32 %v50, 15
    %vm53 = vcmp.eq.s32.totalorder %v51, 0
    %vm54 = vcmp.eq.s32.totalorder %v52, 0
    %vm55 = vcmp.eq.s32.totalorder %v51, 15
    %vm56 = vcmp.eq.s32.totalorder %v52, 15
    %s57 = smul.u32 0, 2
    %s58 = smul.addr %s57, 8
    %s59 = scalar_lea.vmem [#allocation6], %s58
    %v60 = vld [vmem:[%s59] sm:$0xff]
    %v61 = vld [vmem:[%s59 + $0x8] sm:$0xff]
    %62 = vrot.lane.b32.xlu0 %v60, 113
    %v63 = vpop.permute.xlu0 %62
    %64 = vrot.lane.b32.xlu0 %v61, 113
    %v65 = vpop.permute.xlu0 %64
    %vm66 = vcmp.lt.s32.totalorder %v49, 113
    %v67 = vsel %vm66, %v63, %v65
    %v68 = vsel %vm66, %v65, %v63
    %69 = vrot.lane.b32.xlu0 %v60, 1
    %v70 = vpop.permute.xlu0 %69
    %71 = vrot.lane.b32.xlu0 %v61, 1
    %v72 = vpop.permute.xlu0 %71
    %vm73 = vcmp.lt.s32.totalorder %v49, 1
    %v74 = vsel %vm73, %v70, %v72
    %v75 = vsel %vm73, %v72, %v70
    %v76 = vsel %vm53, %v67, %v75
    %v77 = vsel %vm54, %v68, %v74
    %78 = vrot.lane.b32.xlu0 %v60, 15
    %v79 = vpop.permute.xlu0 %78
    %80 = vrot.lane.b32.xlu0 %v61, 15
    %v81 = vpop.permute.xlu0 %80
    %vm82 = vcmp.lt.s32.totalorder %v49, 15
    %v83 = vsel %vm82, %v79, %v81
    %v84 = vsel %vm82, %v81, %v79
    %85 = vrot.lane.b32.xlu0 %v60, 127
    %v86 = vpop.permute.xlu0 %85
    %87 = vrot.lane.b32.xlu0 %v61, 127
    %v88 = vpop.permute.xlu0 %87
    %vm89 = vcmp.lt.s32.totalorder %v49, 127
    %v90 = vsel %vm89, %v86, %v88
    %v91 = vsel %vm89, %v88, %v86
    %v92 = vsel %vm55, %v84, %v90
    %v93 = vsel %vm56, %v83, %v91
    %v94 = vstv %s42
    %v95 = vmul.f32 %v94, %v76
    %v96 = vmul.f32 %v94, %v77
    %v97 = vstv %s43
    %v98 = vmul.f32 %v97, %v60
    %v99 = vmul.f32 %v97, %v61
    %v100 = vadd.f32 %v95, %v98
    %v101 = vadd.f32 %v96, %v99
    %v102 = vstv %s44
    %v103 = vmul.f32 %v102, %v92
    %v104 = vmul.f32 %v102, %v93
    %v105 = vadd.f32 %v100, %v103
    %v106 = vadd.f32 %v101, %v104
    %v107 = vstv %s39
    %v108 = vmul.f32 %v107, %v76
    %v109 = vmul.f32 %v107, %v77
    %v110 = vstv %s40
    %v111 = vmul.f32 %v110, %v60
    %v112 = vmul.f32 %v110, %v61
    %v113 = vadd.f32 %v108, %v111
    %v114 = vadd.f32 %v109, %v112
    %v115 = vstv %s41
    %v116 = vmul.f32 %v115, %v92
    %v117 = vmul.f32 %v115, %v93
    %v118 = vadd.f32 %v113, %v116
    %v119 = vadd.f32 %v114, %v117
    %120 = vrot.lane.b32.xlu0 %v118, 16
    %v121 = vpop.permute.xlu0 %120
    %122 = vrot.lane.b32.xlu0 %v119, 16
    %v123 = vpop.permute.xlu0 %122
    %vm124 = vcmp.lt.s32.totalorder %v49, 16
    %v125 = vsel %vm124, %v121, %v123
    %v126 = vsel %vm124, %v123, %v121
    %v127 = vadd.f32 %v105, %v126
    %v128 = vadd.f32 %v106, %v125
    %v129 = vstv %s45
    %v130 = vmul.f32 %v129, %v76
    %v131 = vmul.f32 %v129, %v77
    %v132 = vstv %s46
    %v133 = vmul.f32 %v132, %v60
    %v134 = vmul.f32 %v132, %v61
    %v135 = vadd.f32 %v130, %v133
    %v136 = vadd.f32 %v131, %v134
    %v137 = vstv %s47
    %v138 = vmul.f32 %v137, %v92
    %v139 = vmul.f32 %v137, %v93
    %v140 = vadd.f32 %v135, %v138
    %v141 = vadd.f32 %v136, %v139
    %142 = vrot.lane.b32.xlu0 %v140, 112
    %v143 = vpop.permute.xlu0 %142
    %144 = vrot.lane.b32.xlu0 %v141, 112
    %v145 = vpop.permute.xlu0 %144
    %vm146 = vcmp.lt.s32.totalorder %v49, 112
    %v147 = vsel %vm146, %v143, %v145
    %v148 = vsel %vm146, %v145, %v143
    %v149 = vadd.f32 %v127, %v147
    %v150 = vadd.f32 %v128, %v148
    %s151 = smul.addr %s57, 8
    %s152 = scalar_lea.vmem [#allocation7], %s151
    %153 = vst [vmem:[%s152] sm:$0xff] %v149
    %154 = vst [vmem:[%s152 + $0x8] sm:$0xff] %v150
    // Predicated region
    $region18: #{tpu_custom_call.1} parent=1 // pred_check
      _
    $region19: #{tpu_custom_call.1} parent=1 // pred_check_branch
      %156 = sbr.rel (0) target = $region21
    $region20: #{tpu_custom_call.1} parent=1 // pred_region
      %158 = vsyncadd [#allocation4], 0
      %s160 = sshll.u32 [#allocation7], 4
      %s161 = int_to_ptr.vmem [resolvable:$true] %s160
      %s162 = sshll.u32 %s2, 4
      %s163 = int_to_ptr.hbm [resolvable:$true] %s162
      %165 = dma.vmem_to_hbm [thread:$0]  %s161, 256, %s163, [#allocation4]
    $region21: #{tpu_custom_call.1} parent=1 // pred_fallthru
      _
    // Predicated region
    $region22: #{tpu_custom_call.1} parent=1 // pred_check
      _
    $region23: #{tpu_custom_call.1} parent=1 // pred_check_branch
      %167 = sbr.rel (0) target = $region25
    $region24: #{tpu_custom_call.1} parent=1 // pred_region
      %169 = dma.done [#allocation4], 256
    $region25: #{tpu_custom_call.1} parent=1 // pred_fallthru
      _
    %170 = vsyncpa [#allocation3], 1
    %171 = vsyncpa [#allocation4], 1
    %172 = vsyncpa [#allocation5], 1

</llo_original>
